<compile_context>
chip_gen: v7x
topology: tpu7x:2x2x1
jax: 0.10.0
libtpu: 0.0.40
codegen_flags: <defaults>
</compile_context>

<pallas_src>
import functools

import jax
import jax.numpy as jnp
from jax import lax
from jax.experimental import pallas as pl
from jax.experimental.pallas import tpu as pltpu

_EPS = 1e-5


def _basic_block_kernel(x_ref, w1_ref, g1_ref, be1_ref, w2_ref, g2_ref, be2_ref,
                        o_ref, *, L, nl_valid, nl_pad):
    x = x_ref[...]                                        # (Cp, NLp) f32

    # Per-column masks, built once in-kernel (cheap VPU iota/compare, reused by both convs).
    flat = lax.broadcasted_iota(jnp.int32, (1, nl_pad), 1)
    pos = flat % L
    valid = (flat < nl_valid)                             # real (non-padded) lane columns
    # A neighbor tap contributes only if it stays inside the same sample AND inside valid lanes;
    # zeroing padded lanes here keeps BN sums exact regardless of where the pad boundary falls.
    mprev = jnp.where(valid & (pos != 0), 1.0, 0.0).astype(jnp.float32)
    mnext = jnp.where(valid & (pos != (L - 1)), 1.0, 0.0).astype(jnp.float32)

    inv_n = jnp.float32(1.0 / nl_valid)

    def conv3(inp, w_ref):
        # k=3 conv as a single fused matmul: stack the three taps along sublanes and hit the
        # MXU once with the host-side fused (Cout, 3*Cin) weight. Taps are built with cyclic
        # rolls (XLU) and masked so no cross-sample / cross-pad leakage occurs.
        xp = pltpu.roll(inp, shift=1, axis=1) * mprev            # x[..., l-1] (0 at sample start)
        xn = pltpu.roll(inp, shift=nl_pad - 1, axis=1) * mnext   # x[..., l+1] (0 at sample end)
        stacked = jnp.concatenate([xp, inp, xn], axis=0)         # (3*Cp, NLp)
        # conv bias intentionally omitted: cancelled exactly by the following training-mode BN.
        return jnp.dot(w_ref[...], stacked, preferred_element_type=jnp.float32)

    def bn_fold(y, g_ref, be_ref):
        # Training-mode BN folded into one per-channel FMA; one-pass statistics. Padded lane
        # columns of y are exactly zero (masked taps + zero-padded inp), so plain sums are exact.
        s1 = jnp.sum(y, axis=1, keepdims=True)
        s2 = jnp.sum(y * y, axis=1, keepdims=True)
        mean = s1 * inv_n
        var = s2 * inv_n - mean * mean                    # biased variance (PyTorch normalization)
        scale = g_ref[...] * lax.rsqrt(var + _EPS)
        shift = be_ref[...] - mean * scale
        return y * scale + shift

    # conv1 -> bn1 -> relu; re-zero padded lanes (BN shift / relu make them nonzero) so that
    # bn2 statistics only see real columns.
    h = jnp.where(valid, jnp.maximum(bn_fold(conv3(x, w1_ref), g1_ref, be1_ref), 0.0), 0.0)
    h = bn_fold(conv3(h, w2_ref), g2_ref, be2_ref)        # conv2 -> bn2
    # stride=1, downsample=None -> identity residual; final ReLU.
    o_ref[...] = jnp.maximum(h + x, 0.0)


def _round_up(v, m):
    return (v + m - 1) // m * m


def basic_block_forward(x, params):
    """x: (N, C, L) float32 in PyTorch NCL layout. Returns (N, C, L)."""
    N, C, L = x.shape
    cout = params["w1"].shape[1]
    assert cout == C, "identity residual requires Cin == Cout (stride=1, no downsample)"

    NL = N * L
    NLp = _round_up(NL, 128)   # lane-dense output stores
    Cp = _round_up(C, 8)       # sublane-aligned channels

    # Layout glue: (N, C, L) -> (C, N*L), zero-padded to hardware-aligned (Cp, NLp).
    x2d = jnp.transpose(x, (1, 0, 2)).reshape(C, NL)
    x2d = jnp.pad(x2d, ((0, Cp - C), (0, NLp - NL)))

    def fuse_w(w):  # (3, Cout, Cin) -> fused + padded (Cp, 3*Cp); tap order [l-1, l, l+1]
        wp = jnp.pad(w, ((0, 0), (0, Cp - cout), (0, Cp - C)))
        return jnp.transpose(wp, (1, 0, 2)).reshape(Cp, 3 * Cp)

    def pad_cvec(v):  # (Cout, 1) -> (Cp, 1)
        return jnp.pad(v, ((0, Cp - cout), (0, 0)))

    w1 = fuse_w(params["w1"])
    w2 = fuse_w(params["w2"])
    g1, be1 = pad_cvec(params["g1"]), pad_cvec(params["be1"])
    g2, be2 = pad_cvec(params["g2"]), pad_cvec(params["be2"])

    kernel = functools.partial(_basic_block_kernel, L=L, nl_valid=NL, nl_pad=NLp)
    vmem = pl.BlockSpec(memory_space=pltpu.MemorySpace.VMEM)

    out2d = pl.pallas_call(
        kernel,
        out_shape=jax.ShapeDtypeStruct((Cp, NLp), jnp.float32),
        in_specs=[vmem] * 7,
        out_specs=vmem,
        compiler_params=pltpu.CompilerParams(vmem_limit_bytes=32 * 1024 * 1024),
    )(x2d, w1, g1, be1, w2, g2, be2)

    out2d = out2d[:C, :NL]
    return jnp.transpose(out2d.reshape(C, N, L), (1, 0, 2))


def ref_forward(x, p):
    """Pure-JAX reference matching the PyTorch forward (training-mode BN, conv biases applied)."""
    def conv1d(inp, w, b):
        w_oik = jnp.transpose(w, (1, 2, 0))  # (3,O,I) -> (O,I,K)
        out = lax.conv_general_dilated(
            inp, w_oik, window_strides=(1,), padding=[(1, 1)],
            dimension_numbers=("NCH", "OIH", "NCH"))
        return out + b.reshape(1, -1, 1)

    def bn(y, g, be):
        mean = jnp.mean(y, axis=(0, 2), keepdims=True)
        var = jnp.mean((y - mean) ** 2, axis=(0, 2), keepdims=True)
        y_hat = (y - mean) * lax.rsqrt(var + _EPS)
        return y_hat * g.reshape(1, -1, 1) + be.reshape(1, -1, 1)

    h = jax.nn.relu(bn(conv1d(x, p["w1"], p["b1"]), p["g1"], p["be1"]))
    h = bn(conv1d(h, p["w2"], p["b2"]), p["g2"], p["be2"])
    return jax.nn.relu(h + x)


if __name__ == "__main__":
    key = jax.random.PRNGKey(0)
    N, C, L = 2, 4, 16          # inplanes = outplanes = 4, stride = 1, downsample = None
    ks = jax.random.split(key, 10)

    params = {
        # conv weights stored as (K=3, Cout, Cin) with tap order [x[l-1], x[l], x[l+1]];
        # biases / BN params as (Cout, 1)
        "w1": 0.2 * jax.random.normal(ks[0], (3, C, C), jnp.float32),
        "b1": 0.1 * jax.random.normal(ks[1], (C, 1), jnp.float32),
        "g1": 1.0 + 0.1 * jax.random.normal(ks[2], (C, 1), jnp.float32),
        "be1": 0.1 * jax.random.normal(ks[3], (C, 1), jnp.float32),
        "w2": 0.2 * jax.random.normal(ks[4], (3, C, C), jnp.float32),
        "b2": 0.1 * jax.random.normal(ks[5], (C, 1), jnp.float32),
        "g2": 1.0 + 0.1 * jax.random.normal(ks[6], (C, 1), jnp.float32),
        "be2": 0.1 * jax.random.normal(ks[7], (C, 1), jnp.float32),
    }
    x = jax.random.normal(ks[9], (N, C, L), jnp.float32)

    out = jax.block_until_ready(basic_block_forward(x, params))
    ref = ref_forward(x, params)

    assert out.shape == (N, C, L)
    if not bool(jnp.allclose(out, ref, atol=1e-4, rtol=1e-4)):
        raise SystemExit("mismatch vs pure-JAX reference")
    print("KERNEL_OK")
</pallas_src>

<mosaic_0001>
module attributes {stable_mosaic.version = 11 : i64} {
  func.func @_basic_block_kernel(%arg0: memref<8x128xf32, #tpu.memory_space<vmem>>, %arg1: memref<8x24xf32, #tpu.memory_space<vmem>>, %arg2: memref<8x1xf32, #tpu.memory_space<vmem>>, %arg3: memref<8x1xf32, #tpu.memory_space<vmem>>, %arg4: memref<8x24xf32, #tpu.memory_space<vmem>>, %arg5: memref<8x1xf32, #tpu.memory_space<vmem>>, %arg6: memref<8x1xf32, #tpu.memory_space<vmem>>, %arg7: memref<8x128xf32, #tpu.memory_space<vmem>>) attributes {dimension_semantics = [], scalar_prefetch = 0 : i64, scratch_operands = 0 : i64, tpu.core_type = #tpu.core_type<tc>} {
    %c0 = arith.constant 0 : index
    %c0_0 = arith.constant 0 : index
    %0 = vector.load %arg0[%c0, %c0_0] : memref<8x128xf32, #tpu.memory_space<vmem>>, vector<8x128xf32>
    %1 = tpu.iota {dimensions = array<i32: 1>} : vector<1x128xi32>
    %c16_i32 = arith.constant 16 : i32
    %c0_i32 = arith.constant 0 : i32
    %2 = arith.cmpi eq, %c16_i32, %c0_i32 : i32
    %c1_i32 = arith.constant 1 : i32
    %3 = arith.select %2, %c1_i32, %c16_i32 : i32
    %4 = vector.broadcast %3 : i32 to vector<1x128xi32>
    %5 = arith.remsi %1, %4 : vector<1x128xi32>
    %c0_i32_1 = arith.constant 0 : i32
    %6 = vector.broadcast %c0_i32_1 : i32 to vector<1x128xi32>
    %7 = arith.cmpi ne, %5, %6 : vector<1x128xi32>
    %c0_i32_2 = arith.constant 0 : i32
    %8 = vector.broadcast %c0_i32_2 : i32 to vector<1x128xi32>
    %9 = arith.cmpi slt, %5, %8 : vector<1x128xi32>
    %c0_i32_3 = arith.constant 0 : i32
    %10 = arith.cmpi slt, %3, %c0_i32_3 : i32
    %11 = vector.broadcast %10 : i1 to vector<1x128xi1>
    %12 = vector.broadcast %11 : vector<1x128xi1> to vector<1x128xi1>
    %13 = arith.xori %9, %12 : vector<1x128xi1>
    %14 = arith.andi %13, %7 : vector<1x128xi1>
    %15 = vector.broadcast %3 : i32 to vector<1x128xi32>
    %16 = arith.addi %5, %15 : vector<1x128xi32>
    %17 = arith.select %14, %16, %5 : vector<1x128xi1>, vector<1x128xi32>
    %c32_i32 = arith.constant 32 : i32
    %18 = vector.broadcast %c32_i32 : i32 to vector<1x128xi32>
    %19 = arith.cmpi slt, %1, %18 : vector<1x128xi32>
    %c0_i32_4 = arith.constant 0 : i32
    %20 = vector.broadcast %c0_i32_4 : i32 to vector<1x128xi32>
    %21 = arith.cmpi ne, %17, %20 : vector<1x128xi32>
    %22 = arith.andi %19, %21 : vector<1x128xi1>
    %cst = arith.constant 1.000000e+00 : f32
    %cst_5 = arith.constant 0.000000e+00 : f32
    %23 = vector.broadcast %cst : f32 to vector<1x128xf32>
    %24 = vector.broadcast %cst_5 : f32 to vector<1x128xf32>
    %25 = arith.select %22, %23, %24 : vector<1x128xi1>, vector<1x128xf32>
    %c15_i32 = arith.constant 15 : i32
    %26 = vector.broadcast %c15_i32 : i32 to vector<1x128xi32>
    %27 = arith.cmpi ne, %17, %26 : vector<1x128xi32>
    %28 = arith.andi %19, %27 : vector<1x128xi1>
    %cst_6 = arith.constant 1.000000e+00 : f32
    %cst_7 = arith.constant 0.000000e+00 : f32
    %29 = vector.broadcast %cst_6 : f32 to vector<1x128xf32>
    %30 = vector.broadcast %cst_7 : f32 to vector<1x128xf32>
    %31 = arith.select %28, %29, %30 : vector<1x128xi1>, vector<1x128xf32>
    %c1_i32_8 = arith.constant 1 : i32
    %32 = tpu.dynamic_rotate %0 by %c1_i32_8 dim 1 : vector<8x128xf32>, i32 -> vector<8x128xf32>
    %33 = vector.broadcast %25 : vector<1x128xf32> to vector<8x128xf32>
    %34 = arith.mulf %32, %33 : vector<8x128xf32>
    %c127_i32 = arith.constant 127 : i32
    %35 = tpu.dynamic_rotate %0 by %c127_i32 dim 1 : vector<8x128xf32>, i32 -> vector<8x128xf32>
    %36 = vector.broadcast %31 : vector<1x128xf32> to vector<8x128xf32>
    %37 = arith.mulf %35, %36 : vector<8x128xf32>
    %38 = tpu.concatenate %34, %0, %37 in 0 : vector<8x128xf32>, vector<8x128xf32>, vector<8x128xf32> -> vector<24x128xf32>
    %c0_9 = arith.constant 0 : index
    %c0_10 = arith.constant 0 : index
    %39 = vector.load %arg1[%c0_9, %c0_10] : memref<8x24xf32, #tpu.memory_space<vmem>>, vector<8x24xf32>
    %cst_11 = arith.constant dense<0.000000e+00> : vector<8x128xf32>
    %40 = tpu.matmul %39, %38, %cst_11 {dimension_numbers = #tpu.dot_dimension_numbers<[1], [0], [0], [1], [0, 0, 1, 1], [], []>} : vector<8x24xf32>, vector<24x128xf32>, vector<8x128xf32> -> vector<8x128xf32>
    %cst_12 = arith.constant dense<0.000000e+00> : vector<8xf32>
    %41 = vector.multi_reduction <add>, %40, %cst_12 [1] : vector<8x128xf32> to vector<8xf32>
    %42 = vector.shape_cast %41 : vector<8xf32> to vector<8x1xf32>
    %43 = arith.mulf %40, %40 : vector<8x128xf32>
    %cst_13 = arith.constant dense<0.000000e+00> : vector<8xf32>
    %44 = vector.multi_reduction <add>, %43, %cst_13 [1] : vector<8x128xf32> to vector<8xf32>
    %45 = vector.shape_cast %44 : vector<8xf32> to vector<8x1xf32>
    %cst_14 = arith.constant 3.125000e-02 : f32
    %46 = vector.broadcast %cst_14 : f32 to vector<8x1xf32>
    %47 = arith.mulf %42, %46 : vector<8x1xf32>
    %cst_15 = arith.constant 3.125000e-02 : f32
    %48 = vector.broadcast %cst_15 : f32 to vector<8x1xf32>
    %49 = arith.mulf %45, %48 : vector<8x1xf32>
    %50 = arith.mulf %47, %47 : vector<8x1xf32>
    %51 = arith.subf %49, %50 : vector<8x1xf32>
    %c0_16 = arith.constant 0 : index
    %c0_17 = arith.constant 0 : index
    %52 = vector.load %arg2[%c0_16, %c0_17] : memref<8x1xf32, #tpu.memory_space<vmem>>, vector<8x1xf32>
    %cst_18 = arith.constant 9.99999974E-6 : f32
    %53 = vector.broadcast %cst_18 : f32 to vector<8x1xf32>
    %54 = arith.addf %51, %53 : vector<8x1xf32>
    %55 = math.rsqrt %54 : vector<8x1xf32>
    %56 = arith.mulf %52, %55 : vector<8x1xf32>
    %c0_19 = arith.constant 0 : index
    %c0_20 = arith.constant 0 : index
    %57 = vector.load %arg3[%c0_19, %c0_20] : memref<8x1xf32, #tpu.memory_space<vmem>>, vector<8x1xf32>
    %58 = arith.mulf %47, %56 : vector<8x1xf32>
    %59 = arith.subf %57, %58 : vector<8x1xf32>
    %60 = vector.broadcast %56 : vector<8x1xf32> to vector<8x128xf32>
    %61 = arith.mulf %40, %60 : vector<8x128xf32>
    %62 = vector.broadcast %59 : vector<8x1xf32> to vector<8x128xf32>
    %63 = arith.addf %61, %62 : vector<8x128xf32>
    %cst_21 = arith.constant 0.000000e+00 : f32
    %64 = vector.broadcast %cst_21 : f32 to vector<8x128xf32>
    %65 = arith.maximumf %63, %64 : vector<8x128xf32>
    %cst_22 = arith.constant 0.000000e+00 : f32
    %66 = vector.shape_cast %19 : vector<1x128xi1> to vector<1x128xi1>
    %67 = vector.broadcast %66 : vector<1x128xi1> to vector<8x128xi1>
    %68 = vector.broadcast %cst_22 : f32 to vector<8x128xf32>
    %69 = arith.select %67, %65, %68 : vector<8x128xi1>, vector<8x128xf32>
    %c1_i32_23 = arith.constant 1 : i32
    %70 = tpu.dynamic_rotate %69 by %c1_i32_23 dim 1 : vector<8x128xf32>, i32 -> vector<8x128xf32>
    %71 = vector.broadcast %25 : vector<1x128xf32> to vector<8x128xf32>
    %72 = arith.mulf %70, %71 : vector<8x128xf32>
    %c127_i32_24 = arith.constant 127 : i32
    %73 = tpu.dynamic_rotate %69 by %c127_i32_24 dim 1 : vector<8x128xf32>, i32 -> vector<8x128xf32>
    %74 = vector.broadcast %31 : vector<1x128xf32> to vector<8x128xf32>
    %75 = arith.mulf %73, %74 : vector<8x128xf32>
    %76 = tpu.concatenate %72, %69, %75 in 0 : vector<8x128xf32>, vector<8x128xf32>, vector<8x128xf32> -> vector<24x128xf32>
    %c0_25 = arith.constant 0 : index
    %c0_26 = arith.constant 0 : index
    %77 = vector.load %arg4[%c0_25, %c0_26] : memref<8x24xf32, #tpu.memory_space<vmem>>, vector<8x24xf32>
    %cst_27 = arith.constant dense<0.000000e+00> : vector<8x128xf32>
    %78 = tpu.matmul %77, %76, %cst_27 {dimension_numbers = #tpu.dot_dimension_numbers<[1], [0], [0], [1], [0, 0, 1, 1], [], []>} : vector<8x24xf32>, vector<24x128xf32>, vector<8x128xf32> -> vector<8x128xf32>
    %cst_28 = arith.constant dense<0.000000e+00> : vector<8xf32>
    %79 = vector.multi_reduction <add>, %78, %cst_28 [1] : vector<8x128xf32> to vector<8xf32>
    %80 = vector.shape_cast %79 : vector<8xf32> to vector<8x1xf32>
    %81 = arith.mulf %78, %78 : vector<8x128xf32>
    %cst_29 = arith.constant dense<0.000000e+00> : vector<8xf32>
    %82 = vector.multi_reduction <add>, %81, %cst_29 [1] : vector<8x128xf32> to vector<8xf32>
    %83 = vector.shape_cast %82 : vector<8xf32> to vector<8x1xf32>
    %cst_30 = arith.constant 3.125000e-02 : f32
    %84 = vector.broadcast %cst_30 : f32 to vector<8x1xf32>
    %85 = arith.mulf %80, %84 : vector<8x1xf32>
    %cst_31 = arith.constant 3.125000e-02 : f32
    %86 = vector.broadcast %cst_31 : f32 to vector<8x1xf32>
    %87 = arith.mulf %83, %86 : vector<8x1xf32>
    %88 = arith.mulf %85, %85 : vector<8x1xf32>
    %89 = arith.subf %87, %88 : vector<8x1xf32>
    %c0_32 = arith.constant 0 : index
    %c0_33 = arith.constant 0 : index
    %90 = vector.load %arg5[%c0_32, %c0_33] : memref<8x1xf32, #tpu.memory_space<vmem>>, vector<8x1xf32>
    %cst_34 = arith.constant 9.99999974E-6 : f32
    %91 = vector.broadcast %cst_34 : f32 to vector<8x1xf32>
    %92 = arith.addf %89, %91 : vector<8x1xf32>
    %93 = math.rsqrt %92 : vector<8x1xf32>
    %94 = arith.mulf %90, %93 : vector<8x1xf32>
    %c0_35 = arith.constant 0 : index
    %c0_36 = arith.constant 0 : index
    %95 = vector.load %arg6[%c0_35, %c0_36] : memref<8x1xf32, #tpu.memory_space<vmem>>, vector<8x1xf32>
    %96 = arith.mulf %85, %94 : vector<8x1xf32>
    %97 = arith.subf %95, %96 : vector<8x1xf32>
    %98 = vector.broadcast %94 : vector<8x1xf32> to vector<8x128xf32>
    %99 = arith.mulf %78, %98 : vector<8x128xf32>
    %100 = vector.broadcast %97 : vector<8x1xf32> to vector<8x128xf32>
    %101 = arith.addf %99, %100 : vector<8x128xf32>
    %102 = arith.addf %101, %0 : vector<8x128xf32>
    %cst_37 = arith.constant 0.000000e+00 : f32
    %103 = vector.broadcast %cst_37 : f32 to vector<8x128xf32>
    %104 = arith.maximumf %102, %103 : vector<8x128xf32>
    %c0_38 = arith.constant 0 : index
    %c0_39 = arith.constant 0 : index
    %105 = vector.load %arg7[%c0_38, %c0_39] : memref<8x128xf32, #tpu.memory_space<vmem>>, vector<8x128xf32>
    tpu.vector_store %arg7[%c0_38, %c0_39], %104 {strides = array<i32>} : memref<8x128xf32, #tpu.memory_space<vmem>>, vector<8x128xf32>,
    return
  }
}

</mosaic_0001>

<llo_original>
// kernel: tpu_custom_call.1
$region0: #{tpu_custom_call.1}
  #allocation0 [shape = 'u32[]', space=smem, size = 0x4, offset = 0x4, fixed_abs, tag = 'smem constant byte address 0x4 - core index']
  #allocation1 [shape = 'u32[144,128]{1,0:T(1,128)}', space=vmem, size = 0x12000, scoped, tag = 'internal scratch']
  %s0 = inlined_call_operand.vmem [shape: f32[8,128], index: 0, kind: input, shape index: {}]
  %s1 = inlined_call_operand.vmem [shape: f32[8,24], index: 1, kind: input, shape index: {}]
  %s2 = inlined_call_operand.vmem [shape: f32[8,1], index: 2, kind: input, shape index: {}]
  %s3 = inlined_call_operand.vmem [shape: f32[8,1], index: 3, kind: input, shape index: {}]
  %s4 = inlined_call_operand.vmem [shape: f32[8,24], index: 4, kind: input, shape index: {}]
  %s5 = inlined_call_operand.vmem [shape: f32[8,1], index: 5, kind: input, shape index: {}]
  %s6 = inlined_call_operand.vmem [shape: f32[8,1], index: 6, kind: input, shape index: {}]
  %s7 = inlined_call_operand.hbm [shape: f32[8,128], index: 7, kind: output, shape index: {}]
  %s8 = sld [smem:[#allocation0]]
  $region38: #{tpu_custom_call.1} parent=0
    _
  %s10 = ssub.s32 1, %s8
  %s11 = scalar_select 0, %s10, %s8
  $region1: #{tpu_custom_call.1} parent=0
    #allocation2 [shape = 'u8[4096]{0}', space=vmem, size = 0x1000, scoped, tag = 'output window, operand 0, single buffered']
    #allocation3 [shape = 's32[1]{0}', space=sflag, size = 0x4, scoped, tag = 'scoped memory for tpu_custom_call.1']
    %12 = vsyncpa [#allocation3], 0
    // Predicated region
    $region2: #{tpu_custom_call.1} parent=1 // pred_check
      _
    $region3: #{tpu_custom_call.1} parent=1 // pred_check_branch
      %14 = sbr.rel (0) target = $region5
    $region4: #{tpu_custom_call.1} parent=1 // pred_region
      _
    $region5: #{tpu_custom_call.1} parent=1 // pred_fallthru
      _
    // Predicated region
    $region6: #{tpu_custom_call.1} parent=1 // pred_check
      _
    $region7: #{tpu_custom_call.1} parent=1 // pred_check_branch
      %16 = sbr.rel (0) target = $region9
    $region8: #{tpu_custom_call.1} parent=1 // pred_region
      _
    $region9: #{tpu_custom_call.1} parent=1 // pred_fallthru
      _
    // Predicated region
    $region10: #{tpu_custom_call.1} parent=1 // pred_check
      _
    $region11: #{tpu_custom_call.1} parent=1 // pred_check_branch
      %18 = sbr.rel (0) target = $region13
    $region12: #{tpu_custom_call.1} parent=1 // pred_region
      _
    $region13: #{tpu_custom_call.1} parent=1 // pred_fallthru
      _
    // Predicated region
    $region14: #{tpu_custom_call.1} parent=1 // pred_check
      _
    $region15: #{tpu_custom_call.1} parent=1 // pred_check_branch
      %20 = sbr.rel (0) target = $region17
    $region16: #{tpu_custom_call.1} parent=1 // pred_region
      _
    $region17: #{tpu_custom_call.1} parent=1 // pred_fallthru
      _
    // Predicated region
    $region18: #{tpu_custom_call.1} parent=1 // pred_check
      _
    $region19: #{tpu_custom_call.1} parent=1 // pred_check_branch
      %22 = sbr.rel (0) target = $region21
    $region20: #{tpu_custom_call.1} parent=1 // pred_region
      _
    $region21: #{tpu_custom_call.1} parent=1 // pred_fallthru
      _
    // Predicated region
    $region22: #{tpu_custom_call.1} parent=1 // pred_check
      _
    $region23: #{tpu_custom_call.1} parent=1 // pred_check_branch
      %24 = sbr.rel (0) target = $region25
    $region24: #{tpu_custom_call.1} parent=1 // pred_region
      _
    $region25: #{tpu_custom_call.1} parent=1 // pred_fallthru
      _
    // Predicated region
    $region26: #{tpu_custom_call.1} parent=1 // pred_check
      _
    $region27: #{tpu_custom_call.1} parent=1 // pred_check_branch
      %26 = sbr.rel (0) target = $region29
    $region28: #{tpu_custom_call.1} parent=1 // pred_region
      _
    $region29: #{tpu_custom_call.1} parent=1 // pred_fallthru
      _
    %v27 = vld [vmem:[%s0] sm:$0xff]
    %v28 = vlaneseq
    %v29 = vand.u32 %v28, 127
    %vm30 = vcmp.lt.s32.totalorder %v29, 0
    %v31 = vsub.s32 0, %v29
    %v32 = vsel %vm30, %v31, %v29
    %v33 = vshrl.u32 %v32, 4
    %v34 = vand.u32 %v32, 15
    %v35 = vsub.s32 0, %v34
    %v36 = vsel %vm30, %v35, %v34
    %vm37 = vcmp.ne.s32.totalorder %v36, 0
    %vm38 = vcmp.lt.s32.totalorder %v36, 0
    %vm39 = vmand %vm38, %vm37
    %v40 = vadd.s32 %v36, 16
    %v41 = vsel %vm39, %v40, %v36
    %vm42 = vcmp.lt.s32.totalorder %v29, 32
    %vm43 = vcmp.ne.s32.totalorder %v41, 0
    %vm44 = vmand %vm42, %vm43
    %v45 = vsel %vm44, 1.0, 0.0
    %vm46 = vcmp.ne.s32.totalorder %v41, 15
    %vm47 = vmand %vm42, %vm46
    %v48 = vsel %vm47, 1.0, 0.0
    %49 = vrot.lane.b32.xlu0 %v27, 1
    %v50 = vpop.permute.xlu0 %49
    %v51 = vmul.f32 %v50, %v45
    %52 = vrot.lane.b32.xlu0 %v27, 127
    %v53 = vpop.permute.xlu0 %52
    %v54 = vmul.f32 %v53, %v48
    %v55 = vld [vmem:[%s1] sm:$0xff]
    %vm56 = vcmask 195584
    %v58 = vsel %vm56, %v55, 0
    %60 = vmatprep.subr.mxu0 0.0
    %61 = vmatpush1.msra.mxu0 %v51
    %62 = vmatprep.subr.mxu0 0.0
    %63 = vmatpush1.msra.mxu0 %v27
    %64 = vmatprep.subr.mxu0 0.0
    %65 = vmatpush1.msra.mxu0 %v54
    %66 = vmatprep.subr.mxu0 0.0
    %67 = vmatpush1.msra.mxu0 0.0
    %68 = vmatprep.subr.mxu0 0.0
    %69 = vmatpush1.msra.mxu0 0.0
    %70 = vmatprep.subr.mxu0 0.0
    %71 = vmatpush1.msra.mxu0 0.0
    %72 = vmatprep.subr.mxu0 0.0
    %73 = vmatpush1.msra.mxu0 0.0
    %74 = vmatprep.subr.mxu0 0.0
    %75 = vmatpush1.msra.mxu0 0.0
    %76 = vmatprep.subr.mxu0 0.0
    %77 = vmatpush1.msra.mxu0 0.0
    %78 = vmatprep.subr.mxu0 0.0
    %79 = vmatpush1.msra.mxu0 0.0
    %80 = vmatprep.subr.mxu0 0.0
    %81 = vmatpush1.msra.mxu0 0.0
    %82 = vmatprep.subr.mxu0 0.0
    %83 = vmatpush1.msra.mxu0 0.0
    %84 = vmatprep.subr.mxu0 0.0
    %85 = vmatpush1.msra.mxu0 0.0
    %86 = vmatprep.subr.mxu0 0.0
    %87 = vmatpush1.msra.mxu0 0.0
    %88 = vmatprep.subr.mxu0 0.0
    %89 = vmatpush1.msra.mxu0 0.0
    %90 = vmatprep.subr.mxu0 0.0
    %91 = vmatpush1.msra.mxu0 0.0
    %92 = vmatprep.subr.mxu0 0.0
    %93 = vmatpush1.msra.mxu0 0.0
    %94 = vmatprep.subr.mxu0 0.0
    %95 = vmatpush1.msra.mxu0 0.0
    %96 = vmatprep.subr.mxu0 0.0
    %97 = vmatpush1.msra.mxu0 0.0
    %98 = vmatprep.subr.mxu0 0.0
    %99 = vmatpush1.msra.mxu0 0.0
    %100 = vmatprep.subr.mxu0 0.0
    %101 = vmatpush1.msra.mxu0 0.0
    %102 = vmatprep.subr.mxu0 0.0
    %103 = vmatpush1.msra.mxu0 0.0
    %104 = vmatprep.subr.mxu0 0.0
    %105 = vmatpush1.msra.mxu0 0.0
    %106 = vmatprep.subr.mxu0 0.0
    %107 = vmatpush1.msra.mxu0 0.0
    %108 = vmatprep.subr.mxu0 0.0
    %109 = vmatpush1.msra.mxu0 0.0
    %110 = vmatprep.subr.mxu0 0.0
    %111 = vmatpush1.msra.mxu0 0.0
    %112 = vmatprep.subr.mxu0 0.0
    %113 = vmatpush1.msra.mxu0 0.0
    %114 = vmatprep.subr.mxu0 0.0
    %115 = vmatpush1.msra.mxu0 0.0
    %116 = vmatprep.subr.mxu0 0.0
    %117 = vmatpush1.msra.mxu0 0.0
    %118 = vmatprep.subr.mxu0 0.0
    %119 = vmatpush1.msra.mxu0 0.0
    %120 = vmatprep.subr.mxu0 0.0
    %121 = vmatpush1.msra.mxu0 0.0
    %122 = vmatprep.subr.mxu0 0.0
    %123 = vmatpush1.msra.mxu0 0.0
    %124 = vmatprep.mubr.f32.mxu0 0.0
    %125 = vmatmul.mubr.f32.gmra.mrb[0].mxu0 %v58
    %v126 = vpop.f32.mrb[0].mxu0
    %v127 = vadd.f32 0.0, %v126
    %v128 = vpop.f32.mrb[0].mxu0
    %129 = vdwg.mxu0
    %130 = vadd.xlane.f32.xlu0 %v127
    %v131 = vpop.xlane.xlu0 %130
    %v132 = vmul.f32 %v127, %v127
    %133 = vadd.xlane.f32.xlu0 %v132
    %v134 = vpop.xlane.xlu0 %133
    %v135 = vmul.f32 %v131, 0.03125
    %v136 = vmul.f32 %v134, 0.03125
    %v137 = vmul.f32 %v135, %v135
    %v138 = vsub.f32 %v136, %v137
    %v139 = vld [vmem:[%s2] sm:$0xff]
    %v140 = vadd.f32 %v138, 1e-05
    %v141 = vrsqrt.pop %v140
    %v142 = vmul.f32 %v139, %v141
    %v143 = vld [vmem:[%s3] sm:$0xff]
    %v144 = vmul.f32 %v135, %v142
    %v145 = vsub.f32 %v143, %v144
    %147 = vset.pattern.permute.xlu0 0
    %148 = vperm.xlu0 %147, %v142
    %v149 = vpop.permute.xlu0 %148
    %v151 = vmul.f32 %v127, %v149
    %153 = vset.pattern.permute.xlu0 0
    %154 = vperm.xlu0 %153, %v145
    %v155 = vpop.permute.xlu0 %154
    %v157 = vadd.f32 %v151, %v155
    %v158 = vmax.f32 %v157, 0.0
    %v159 = vsel %vm42, 1, 0
    %vm160 = vcmp.eq.s32.totalorder %v159, 1
    %v161 = vsel %vm160, %v158, 0.0
    %162 = vrot.lane.b32.xlu0 %v161, 1
    %v163 = vpop.permute.xlu0 %162
    %v164 = vmul.f32 %v163, %v45
    %165 = vrot.lane.b32.xlu0 %v161, 127
    %v166 = vpop.permute.xlu0 %165
    %v167 = vmul.f32 %v166, %v48
    %v168 = vld [vmem:[%s4] sm:$0xff]
    %v170 = vsel %vm56, %v168, 0
    %172 = vmatprep.subr.mxu0 0.0
    %173 = vmatpush1.msra.mxu0 %v164
    %174 = vmatprep.subr.mxu0 0.0
    %175 = vmatpush1.msra.mxu0 %v161
    %176 = vmatprep.subr.mxu0 0.0
    %177 = vmatpush1.msra.mxu0 %v167
    %178 = vmatprep.subr.mxu0 0.0
    %179 = vmatpush1.msra.mxu0 0.0
    %180 = vmatprep.subr.mxu0 0.0
    %181 = vmatpush1.msra.mxu0 0.0
    %182 = vmatprep.subr.mxu0 0.0
    %183 = vmatpush1.msra.mxu0 0.0
    %184 = vmatprep.subr.mxu0 0.0
    %185 = vmatpush1.msra.mxu0 0.0
    %186 = vmatprep.subr.mxu0 0.0
    %187 = vmatpush1.msra.mxu0 0.0
    %188 = vmatprep.subr.mxu0 0.0
    %189 = vmatpush1.msra.mxu0 0.0
    %190 = vmatprep.subr.mxu0 0.0
    %191 = vmatpush1.msra.mxu0 0.0
    %192 = vmatprep.subr.mxu0 0.0
    %193 = vmatpush1.msra.mxu0 0.0
    %194 = vmatprep.subr.mxu0 0.0
    %195 = vmatpush1.msra.mxu0 0.0
    %196 = vmatprep.subr.mxu0 0.0
    %197 = vmatpush1.msra.mxu0 0.0
    %198 = vmatprep.subr.mxu0 0.0
    %199 = vmatpush1.msra.mxu0 0.0
    %200 = vmatprep.subr.mxu0 0.0
    %201 = vmatpush1.msra.mxu0 0.0
    %202 = vmatprep.subr.mxu0 0.0
    %203 = vmatpush1.msra.mxu0 0.0
    %204 = vmatprep.subr.mxu0 0.0
    %205 = vmatpush1.msra.mxu0 0.0
    %206 = vmatprep.subr.mxu0 0.0
    %207 = vmatpush1.msra.mxu0 0.0
    %208 = vmatprep.subr.mxu0 0.0
    %209 = vmatpush1.msra.mxu0 0.0
    %210 = vmatprep.subr.mxu0 0.0
    %211 = vmatpush1.msra.mxu0 0.0
    %212 = vmatprep.subr.mxu0 0.0
    %213 = vmatpush1.msra.mxu0 0.0
    %214 = vmatprep.subr.mxu0 0.0
    %215 = vmatpush1.msra.mxu0 0.0
    %216 = vmatprep.subr.mxu0 0.0
    %217 = vmatpush1.msra.mxu0 0.0
    %218 = vmatprep.subr.mxu0 0.0
    %219 = vmatpush1.msra.mxu0 0.0
    %220 = vmatprep.subr.mxu0 0.0
    %221 = vmatpush1.msra.mxu0 0.0
    %222 = vmatprep.subr.mxu0 0.0
    %223 = vmatpush1.msra.mxu0 0.0
    %224 = vmatprep.subr.mxu0 0.0
    %225 = vmatpush1.msra.mxu0 0.0
    %226 = vmatprep.subr.mxu0 0.0
    %227 = vmatpush1.msra.mxu0 0.0
    %228 = vmatprep.subr.mxu0 0.0
    %229 = vmatpush1.msra.mxu0 0.0
    %230 = vmatprep.subr.mxu0 0.0
    %231 = vmatpush1.msra.mxu0 0.0
    %232 = vmatprep.subr.mxu0 0.0
    %233 = vmatpush1.msra.mxu0 0.0
    %234 = vmatprep.subr.mxu0 0.0
    %235 = vmatpush1.msra.mxu0 0.0
    %236 = vmatprep.mubr.f32.mxu0 0.0
    %237 = vmatmul.mubr.f32.gmra.mrb[0].mxu0 %v170
    %v238 = vpop.f32.mrb[0].mxu0
    %v239 = vadd.f32 0.0, %v238
    %v240 = vpop.f32.mrb[0].mxu0
    %241 = vdwg.mxu0
    %242 = vadd.xlane.f32.xlu0 %v239
    %v243 = vpop.xlane.xlu0 %242
    %v244 = vmul.f32 %v239, %v239
    %245 = vadd.xlane.f32.xlu0 %v244
    %v246 = vpop.xlane.xlu0 %245
    %v247 = vmul.f32 %v243, 0.03125
    %v248 = vmul.f32 %v246, 0.03125
    %v249 = vmul.f32 %v247, %v247
    %v250 = vsub.f32 %v248, %v249
    %v251 = vld [vmem:[%s5] sm:$0xff]
    %v252 = vadd.f32 %v250, 1e-05
    %v253 = vrsqrt.pop %v252
    %v254 = vmul.f32 %v251, %v253
    %v255 = vld [vmem:[%s6] sm:$0xff]
    %v256 = vmul.f32 %v247, %v254
    %v257 = vsub.f32 %v255, %v256
    %259 = vset.pattern.permute.xlu0 0
    %260 = vperm.xlu0 %259, %v254
    %v261 = vpop.permute.xlu0 %260
    %v263 = vmul.f32 %v239, %v261
    %265 = vset.pattern.permute.xlu0 0
    %266 = vperm.xlu0 %265, %v257
    %v267 = vpop.permute.xlu0 %266
    %v269 = vadd.f32 %v263, %v267
    %v270 = vadd.f32 %v269, %v27
    %v271 = vmax.f32 %v270, 0.0
    %272 = vst [vmem:[#allocation2] sm:$0xff] %v271
    // Predicated region
    $region30: #{tpu_custom_call.1} parent=1 // pred_check
      _
    $region31: #{tpu_custom_call.1} parent=1 // pred_check_branch
      %274 = sbr.rel (0) target = $region33
    $region32: #{tpu_custom_call.1} parent=1 // pred_region
      %s276 = ssub.s32 128, 128
      %277 = vsyncadd [#allocation3], %s276
      %s279 = sshll.u32 [#allocation2], 4
      %s280 = int_to_ptr.vmem [resolvable:$true] %s279
      %282 = dma.vmem_to_hbm [thread:$0]  %s280, 128, %s7, [#allocation3]
    $region33: #{tpu_custom_call.1} parent=1 // pred_fallthru
      _
    // Predicated region
    $region34: #{tpu_custom_call.1} parent=1 // pred_check
      _
    $region35: #{tpu_custom_call.1} parent=1 // pred_check_branch
      %284 = sbr.rel (0) target = $region37
    $region36: #{tpu_custom_call.1} parent=1 // pred_region
      %285 = dma.done [#allocation3], 128
    $region37: #{tpu_custom_call.1} parent=1 // pred_fallthru
      _
    %286 = vsyncpa [#allocation3], 1

</llo_original>
